<compile_context>
chip_gen: v7x
topology: tpu7x:2x2x1
jax: 0.10.0
libtpu: 0.0.40
codegen_flags: <defaults>
</compile_context>

<pallas_src>
import jax
import jax.numpy as jnp
from jax.experimental import pallas as pl
from jax.experimental.pallas import tpu as pltpu

PACK = 4  # pack 4 rows of `features_dim` into one lane-dense row


def cls_pg_fused_kernel(x_ref, w_ref, b_ref, o_ref):
    # One MXU dot per tile: (TBp, 4F) @ (4F, 4*32) + (1, 4*32), f32 accumulate.
    y = jnp.dot(x_ref[...], w_ref[...], preferred_element_type=jnp.float32)
    o_ref[...] = (y + b_ref[...]).astype(o_ref.dtype)


def _round_up(n, m):
    return ((n + m - 1) // m) * m


def _device_kind():
    try:
        return jax.devices()[0].device_kind.lower()
    except Exception:
        return ""


def _default_block_rows_packed(kind):
    # Packed rows are 256 f32 wide (1 KiB/row). Targets ~4-16 MiB of
    # double-buffered traffic per grid step, well under the 32 MiB scoped VMEM
    # limit on every generation (v7x only has 64 MiB physical VMEM).
    if "v5" in kind:
        return 1024   # ~2048-4096 original rows
    if "v7" in kind:
        return 4096   # ~16384 original rows
    return 2048       # v6e default (~8192 original rows)


def cls_pg_forward(x, w1, b1, w2, b2, *, block_rows_packed=None,
                   out_dtype=jnp.float32):
    """x: (B, features_dim); w1: (features_dim, 32); b1: (1, 32);
       w2: (32, 32); b2: (1, 32)  ->  (B, 32) in `out_dtype` (default f32)."""
    B, F = x.shape
    out_dim = w2.shape[1]

    # ---- algebraic fusion of the two Linear layers (done once, outside kernel) ----
    w_f = jnp.dot(w1, w2, preferred_element_type=jnp.float32)           # (F, 32)
    b_f = (jnp.dot(b1, w2, preferred_element_type=jnp.float32) + b2)    # (1, 32)
    b_f = b_f.astype(jnp.float32)

    # Only follow x into bf16 if x is *already* bf16 upstream; never cast the
    # f32 input in the wrapper (that adds HBM traffic on a bandwidth-bound op).
    if x.dtype == jnp.bfloat16:
        w_f = w_f.astype(jnp.bfloat16)

    # ---- 4-way lane-density pack ----
    # x (B, F) -> (B/PACK, PACK*F): row-major contiguous, free metadata reshape.
    pad = (-B) % PACK
    xp = jnp.pad(x, ((0, pad), (0, 0))) if pad else x
    Bp = (B + pad) // PACK
    xp = xp.reshape(Bp, PACK * F)

    # Block-diagonal fused weight (PACK*F, PACK*out_dim) and tiled bias.
    w_blk = jnp.kron(jnp.eye(PACK, dtype=w_f.dtype), w_f)   # blkdiag(w_f, ..., w_f)
    b_blk = jnp.tile(b_f, (1, PACK))                         # (1, PACK*out_dim)
    n_out = PACK * out_dim

    # ---- batch tiling ----
    kind = _device_kind()
    if block_rows_packed is None:
        block_rows_packed = _default_block_rows_packed(kind)
    # v7x has 2 TensorCores: keep >=4 grid steps per core so "parallel" sharding
    # and double-buffering actually engage; elsewhere keep >=2 steps.
    min_steps = 8 if "v7" in kind else 2
    if Bp < 2 * 8:
        TBp = Bp  # too small to split: single full-array block
    else:
        TBp = min(block_rows_packed,
                  max(8, _round_up(pl.cdiv(Bp, min_steps), 8)))
    grid = (pl.cdiv(Bp, TBp),)

    # ---- cost estimate (scheduler hint) ----
    flops = 2 * Bp * (PACK * F) * n_out  # MXU flops incl. structural zeros
    bytes_accessed = (
        Bp * PACK * F * xp.dtype.itemsize            # read packed x
        + Bp * n_out * jnp.dtype(out_dtype).itemsize # write packed y
        + w_blk.size * w_blk.dtype.itemsize          # fused block-diag weight
        + b_blk.size * b_blk.dtype.itemsize          # fused bias
    )

    # Weight / bias stay VMEM-resident (constant index_map); single-buffer them.
    try:
        w_spec = pl.BlockSpec(w_blk.shape, lambda i: (0, 0),
                              pipeline_mode=pl.Buffered(1))
        b_spec = pl.BlockSpec(b_blk.shape, lambda i: (0, 0),
                              pipeline_mode=pl.Buffered(1))
    except TypeError:  # older BlockSpec signature without pipeline_mode
        w_spec = pl.BlockSpec(w_blk.shape, lambda i: (0, 0))
        b_spec = pl.BlockSpec(b_blk.shape, lambda i: (0, 0))

    yp = pl.pallas_call(
        cls_pg_fused_kernel,
        out_shape=jax.ShapeDtypeStruct((Bp, n_out), out_dtype),
        grid=grid,
        in_specs=[
            pl.BlockSpec((TBp, PACK * F), lambda i: (i, 0)),   # packed x, tiled
            w_spec,                                            # resident weight
            b_spec,                                            # resident bias
        ],
        out_specs=pl.BlockSpec((TBp, n_out), lambda i: (i, 0)),
        compiler_params=pltpu.CompilerParams(
            dimension_semantics=("parallel",),      # batch tiles are independent
            vmem_limit_bytes=32 * 1024 * 1024,
        ),
        cost_estimate=pl.CostEstimate(
            flops=flops, transcendentals=0, bytes_accessed=bytes_accessed),
    )(xp, w_blk, b_blk)

    # (B/PACK, PACK*32) -> (B, 32): free row-major reshape; drop pad rows.
    y = yp.reshape(Bp * PACK, out_dim)
    return y[:B] if pad else y


def init_cls_pg_params(key, features_dim=64, hidden=32, out=32, dtype=jnp.float32):
    """Deterministic init mimicking PyTorch's default Linear init
    (uniform in [-1/sqrt(fan_in), 1/sqrt(fan_in)])."""
    k1, k2, k3, k4 = jax.random.split(key, 4)
    bound1 = 1.0 / (features_dim ** 0.5)
    bound2 = 1.0 / (hidden ** 0.5)
    w1 = jax.random.uniform(k1, (features_dim, hidden), dtype, -bound1, bound1)
    b1 = jax.random.uniform(k2, (1, hidden), dtype, -bound1, bound1)
    w2 = jax.random.uniform(k3, (hidden, out), dtype, -bound2, bound2)
    b2 = jax.random.uniform(k4, (1, out), dtype, -bound2, bound2)
    return w1, b1, w2, b2


if __name__ == "__main__":
    key = jax.random.PRNGKey(0)
    kp, kx1, kx2, kx3 = jax.random.split(key, 4)

    features_dim = 64
    w1, b1, w2, b2 = init_cls_pg_params(kp, features_dim=features_dim)

    def ref_fn(x):
        return (x @ w1 + b1) @ w2 + b2

    # --- small batch: single full-array packed block ---
    x = jax.random.normal(kx1, (8, features_dim), jnp.float32)
    out = jax.block_until_ready(cls_pg_forward(x, w1, b1, w2, b2))
    assert out.shape == (8, 32), out.shape
    assert jnp.allclose(out, ref_fn(x), atol=1e-5, rtol=1e-5), "mismatch (small batch)"

    # --- batch not divisible by 4: exercises the pad + slice path ---
    x = jax.random.normal(kx2, (10, features_dim), jnp.float32)
    out = jax.block_until_ready(cls_pg_forward(x, w1, b1, w2, b2))
    assert out.shape == (10, 32), out.shape
    assert jnp.allclose(out, ref_fn(x), atol=1e-5, rtol=1e-5), "mismatch (padded batch)"

    # --- multi-tile batch: exercises the pipelined (>=2 step) batch grid ---
    x = jax.random.normal(kx3, (4096, features_dim), jnp.float32)
    out = jax.block_until_ready(cls_pg_forward(x, w1, b1, w2, b2))
    assert out.shape == (4096, 32), out.shape
    assert jnp.allclose(out, ref_fn(x), atol=1e-5, rtol=1e-5), "mismatch (tiled batch)"

    print("KERNEL_OK")
</pallas_src>

<mosaic_0001>
module attributes {stable_mosaic.version = 11 : i64} {
  func.func @cls_pg_fused_kernel(%arg0: i32, %arg1: memref<2x256xf32, #tpu.memory_space<vmem>>, %arg2: memref<256x128xf32, #tpu.memory_space<vmem>>, %arg3: memref<1x128xf32, #tpu.memory_space<vmem>>, %arg4: memref<2x128xf32, #tpu.memory_space<vmem>>) attributes {dimension_semantics = [#tpu.dimension_semantics<parallel>], iteration_bounds = array<i64: 1>, scalar_prefetch = 0 : i64, scratch_operands = 0 : i64, tpu.core_type = #tpu.core_type<tc>, window_params = [{transform_indices = @transform_0, window_bounds = array<i64: 2, 256>}, {pipeline_mode = #tpu.pipeline_mode<synchronous>, transform_indices = @transform_1, window_bounds = array<i64: 256, 128>}, {pipeline_mode = #tpu.pipeline_mode<synchronous>, transform_indices = @transform_2, window_bounds = array<i64: 1, 128>}, {transform_indices = @transform_3, window_bounds = array<i64: 2, 128>}]} {
    %c0 = arith.constant 0 : index
    %c0_0 = arith.constant 0 : index
    %0 = vector.load %arg1[%c0, %c0_0] : memref<2x256xf32, #tpu.memory_space<vmem>>, vector<2x256xf32>
    %c0_1 = arith.constant 0 : index
    %c0_2 = arith.constant 0 : index
    %1 = vector.load %arg2[%c0_1, %c0_2] : memref<256x128xf32, #tpu.memory_space<vmem>>, vector<256x128xf32>
    %cst = arith.constant dense<0.000000e+00> : vector<2x128xf32>
    %2 = tpu.matmul %0, %1, %cst {dimension_numbers = #tpu.dot_dimension_numbers<[1], [0], [0], [1], [0, 0, 1, 1], [], []>} : vector<2x256xf32>, vector<256x128xf32>, vector<2x128xf32> -> vector<2x128xf32>
    %c0_3 = arith.constant 0 : index
    %c0_4 = arith.constant 0 : index
    %3 = vector.load %arg3[%c0_3, %c0_4] : memref<1x128xf32, #tpu.memory_space<vmem>>, vector<1x128xf32>
    %4 = vector.broadcast %3 : vector<1x128xf32> to vector<2x128xf32>
    %5 = arith.addf %2, %4 : vector<2x128xf32>
    %c0_5 = arith.constant 0 : index
    %c0_6 = arith.constant 0 : index
    %6 = vector.load %arg4[%c0_5, %c0_6] : memref<2x128xf32, #tpu.memory_space<vmem>>, vector<2x128xf32>
    tpu.vector_store %arg4[%c0_5, %c0_6], %5 {strides = array<i32>} : memref<2x128xf32, #tpu.memory_space<vmem>>, vector<2x128xf32>,
    return
  }
  func.func @transform_0(%arg0: i32) -> (i32, i32) {
    %c0_i32 = arith.constant 0 : i32
    %c0_i32_0 = arith.constant 0 : i32
    return %arg0, %c0_i32 : i32, i32
  }
  func.func @transform_1(%arg0: i32) -> (i32, i32) {
    %c0_i32 = arith.constant 0 : i32
    %c0_i32_0 = arith.constant 0 : i32
    %c0_i32_1 = arith.constant 0 : i32
    return %c0_i32, %c0_i32_0 : i32, i32
  }
  func.func @transform_2(%arg0: i32) -> (i32, i32) {
    %c0_i32 = arith.constant 0 : i32
    %c0_i32_0 = arith.constant 0 : i32
    %c0_i32_1 = arith.constant 0 : i32
    return %c0_i32, %c0_i32_0 : i32, i32
  }
  func.func @transform_3(%arg0: i32) -> (i32, i32) {
    %c0_i32 = arith.constant 0 : i32
    %c0_i32_0 = arith.constant 0 : i32
    return %arg0, %c0_i32 : i32, i32
  }
}

</mosaic_0001>

<llo_original>
// kernel: tpu_custom_call.1
$region0: #{tpu_custom_call.1}
  #allocation0 [shape = 'u32[]', space=smem, size = 0x4, offset = 0x4, fixed_abs, tag = 'smem constant byte address 0x4 - core index']
  #allocation1 [shape = 'u32[144,128]{1,0:T(1,128)}', space=vmem, size = 0x12000, scoped, tag = 'internal scratch']
  %s0 = inlined_call_operand.hbm [shape: f32[2,256], index: 0, kind: input, shape index: {}]
  %s1 = inlined_call_operand.hbm [shape: f32[256,128], index: 1, kind: input, shape index: {}]
  %s2 = inlined_call_operand.vmem [shape: f32[1,128], index: 2, kind: input, shape index: {}]
  %s3 = inlined_call_operand.hbm [shape: f32[2,128], index: 3, kind: output, shape index: {}]
  %s4 = sld [smem:[#allocation0]]
  $region30: #{tpu_custom_call.1} parent=0
    _
  %s6 = ssub.s32 1, %s4
  %s7 = scalar_select 0, %s6, %s4
  $region1: #{tpu_custom_call.1} parent=0
    #allocation2 [shape = 'u8[2048]{0}', space=vmem, size = 0x800, scoped, tag = 'input window, operand 0, single buffered']
    #allocation3 [shape = 's32[1]{0}', space=sflag, size = 0x4, scoped, tag = 'scoped memory for tpu_custom_call.1']
    #allocation4 [shape = 's32[1]{0}', space=sflag, size = 0x4, scoped, tag = 'scoped memory for tpu_custom_call.1']
    #allocation5 [shape = 'u8[131072]{0}', space=vmem, size = 0x20000, scoped, tag = 'input window, operand 1, single buffered']
    #allocation6 [shape = 's32[1]{0}', space=sflag, size = 0x4, scoped, tag = 'scoped memory for tpu_custom_call.1']
    #allocation7 [shape = 'u8[1024]{0}', space=vmem, size = 0x400, scoped, tag = 'output window, operand 0, single buffered']
    %8 = vsyncpa [#allocation3], 0
    %9 = vsyncpa [#allocation6], 0
    %10 = vsyncpa [#allocation4], 0
    // Predicated region
    $region2: #{tpu_custom_call.1} parent=1 // pred_check
      _
    $region3: #{tpu_custom_call.1} parent=1 // pred_check_branch
      %12 = sbr.rel (0) target = $region5
    $region4: #{tpu_custom_call.1} parent=1 // pred_region
      %s14 = ssub.s32 64, 64
      %15 = vsyncadd [#allocation3], %s14
      %s17 = sshll.u32 [#allocation2], 4
      %s18 = int_to_ptr.vmem [resolvable:$true] %s17
      %20 = dma.hbm_to_vmem [thread:$0]  %s0, 64, %s18, [#allocation3]
    $region5: #{tpu_custom_call.1} parent=1 // pred_fallthru
      _
    // Predicated region
    $region6: #{tpu_custom_call.1} parent=1 // pred_check
      _
    $region7: #{tpu_custom_call.1} parent=1 // pred_check_branch
      %22 = sbr.rel (0) target = $region9
    $region8: #{tpu_custom_call.1} parent=1 // pred_region
      %s24 = ssub.s32 4096, 4096
      %25 = vsyncadd [#allocation6], %s24
      %s26 = sshll.u32 [#allocation5], 4
      %s27 = int_to_ptr.vmem [resolvable:$true] %s26
      %32 = dma.hbm_to_vmem [thread:$0]  %s1, 4096, %s27, [#allocation6], 128, 128, 8
    $region9: #{tpu_custom_call.1} parent=1 // pred_fallthru
      _
    // Predicated region
    $region10: #{tpu_custom_call.1} parent=1 // pred_check
      _
    $region11: #{tpu_custom_call.1} parent=1 // pred_check_branch
      %34 = sbr.rel (0) target = $region13
    $region12: #{tpu_custom_call.1} parent=1 // pred_region
      _
    $region13: #{tpu_custom_call.1} parent=1 // pred_fallthru
      _
    // Predicated region
    $region14: #{tpu_custom_call.1} parent=1 // pred_check
      _
    $region15: #{tpu_custom_call.1} parent=1 // pred_check_branch
      %36 = sbr.rel (0) target = $region17
    $region16: #{tpu_custom_call.1} parent=1 // pred_region
      %37 = dma.done [#allocation3], 64
    $region17: #{tpu_custom_call.1} parent=1 // pred_fallthru
      _
    // Predicated region
    $region18: #{tpu_custom_call.1} parent=1 // pred_check
      _
    $region19: #{tpu_custom_call.1} parent=1 // pred_check_branch
      %39 = sbr.rel (0) target = $region21
    $region20: #{tpu_custom_call.1} parent=1 // pred_region
      %40 = dma.done [#allocation6], 4096
    $region21: #{tpu_custom_call.1} parent=1 // pred_fallthru
      _
    %v41 = vld [vmem:[#allocation2] sm:$0xf]
    %v42 = vld [vmem:[#allocation5] sm:$0xff]
    %v43 = vld [vmem:[#allocation5 + $0x8] sm:$0xff]
    %v44 = vld [vmem:[#allocation5 + $0x10] sm:$0xff]
    %v45 = vld [vmem:[#allocation5 + $0x18] sm:$0xff]
    %v46 = vld [vmem:[#allocation5 + $0x20] sm:$0xff]
    %v47 = vld [vmem:[#allocation5 + $0x28] sm:$0xff]
    %v48 = vld [vmem:[#allocation5 + $0x30] sm:$0xff]
    %v49 = vld [vmem:[#allocation5 + $0x38] sm:$0xff]
    %v50 = vld [vmem:[#allocation5 + $0x40] sm:$0xff]
    %v51 = vld [vmem:[#allocation5 + $0x48] sm:$0xff]
    %v52 = vld [vmem:[#allocation5 + $0x50] sm:$0xff]
    %v53 = vld [vmem:[#allocation5 + $0x58] sm:$0xff]
    %v54 = vld [vmem:[#allocation5 + $0x60] sm:$0xff]
    %v55 = vld [vmem:[#allocation5 + $0x68] sm:$0xff]
    %v56 = vld [vmem:[#allocation5 + $0x70] sm:$0xff]
    %v57 = vld [vmem:[#allocation5 + $0x78] sm:$0xff]
    %v58 = vld [vmem:[#allocation5 + $0x80] sm:$0xff]
    %v59 = vld [vmem:[#allocation5 + $0x88] sm:$0xff]
    %v60 = vld [vmem:[#allocation5 + $0x90] sm:$0xff]
    %v61 = vld [vmem:[#allocation5 + $0x98] sm:$0xff]
    %v62 = vld [vmem:[#allocation5 + $0xa0] sm:$0xff]
    %v63 = vld [vmem:[#allocation5 + $0xa8] sm:$0xff]
    %v64 = vld [vmem:[#allocation5 + $0xb0] sm:$0xff]
    %v65 = vld [vmem:[#allocation5 + $0xb8] sm:$0xff]
    %v66 = vld [vmem:[#allocation5 + $0xc0] sm:$0xff]
    %v67 = vld [vmem:[#allocation5 + $0xc8] sm:$0xff]
    %v68 = vld [vmem:[#allocation5 + $0xd0] sm:$0xff]
    %v69 = vld [vmem:[#allocation5 + $0xd8] sm:$0xff]
    %v70 = vld [vmem:[#allocation5 + $0xe0] sm:$0xff]
    %v71 = vld [vmem:[#allocation5 + $0xe8] sm:$0xff]
    %v72 = vld [vmem:[#allocation5 + $0xf0] sm:$0xff]
    %v73 = vld [vmem:[#allocation5 + $0xf8] sm:$0xff]
    %v74 = vld [vmem:[%s2] sm:$0x1]
    %v76 = vlaneseq
    %v77 = vshrl.u32 %v76, 7
    %v78 = vsub.s32 0, %v77
    %v79 = vrot.slane %v74, %v78
    %v83 = vunpack.c.l.s4 1983009808
    %v84 = vunpack.c.0.s8 %v83
    %v85 = vlaneseq
    %v86 = vshrl.u32 %v85, 7
    %v87 = vsub.s32 %v84, %v86
    %v88 = vrot.slane %v41, %v87
    %v89 = vcombine.high %v88, %v88
    %92 = vmatprep.subr.mxu0 0.0
    %93 = vmatpush1.msra.mxu0 %v42
    %94 = vmatprep.subr.mxu0 0.0
    %95 = vmatpush1.msra.mxu0 %v43
    %96 = vmatprep.subr.mxu0 0.0
    %97 = vmatpush1.msra.mxu0 %v44
    %98 = vmatprep.subr.mxu0 0.0
    %99 = vmatpush1.msra.mxu0 %v45
    %100 = vmatprep.subr.mxu0 0.0
    %101 = vmatpush1.msra.mxu0 %v46
    %102 = vmatprep.subr.mxu0 0.0
    %103 = vmatpush1.msra.mxu0 %v47
    %104 = vmatprep.subr.mxu0 0.0
    %105 = vmatpush1.msra.mxu0 %v48
    %106 = vmatprep.subr.mxu0 0.0
    %107 = vmatpush1.msra.mxu0 %v49
    %108 = vmatprep.subr.mxu0 0.0
    %109 = vmatpush1.msra.mxu0 %v50
    %110 = vmatprep.subr.mxu0 0.0
    %111 = vmatpush1.msra.mxu0 %v51
    %112 = vmatprep.subr.mxu0 0.0
    %113 = vmatpush1.msra.mxu0 %v52
    %114 = vmatprep.subr.mxu0 0.0
    %115 = vmatpush1.msra.mxu0 %v53
    %116 = vmatprep.subr.mxu0 0.0
    %117 = vmatpush1.msra.mxu0 %v54
    %118 = vmatprep.subr.mxu0 0.0
    %119 = vmatpush1.msra.mxu0 %v55
    %120 = vmatprep.subr.mxu0 0.0
    %121 = vmatpush1.msra.mxu0 %v56
    %122 = vmatprep.subr.mxu0 0.0
    %123 = vmatpush1.msra.mxu0 %v57
    %124 = vmatprep.subr.mxu0 0.0
    %125 = vmatpush1.msra.mxu0 %v58
    %126 = vmatprep.subr.mxu0 0.0
    %127 = vmatpush1.msra.mxu0 %v59
    %128 = vmatprep.subr.mxu0 0.0
    %129 = vmatpush1.msra.mxu0 %v60
    %130 = vmatprep.subr.mxu0 0.0
    %131 = vmatpush1.msra.mxu0 %v61
    %132 = vmatprep.subr.mxu0 0.0
    %133 = vmatpush1.msra.mxu0 %v62
    %134 = vmatprep.subr.mxu0 0.0
    %135 = vmatpush1.msra.mxu0 %v63
    %136 = vmatprep.subr.mxu0 0.0
    %137 = vmatpush1.msra.mxu0 %v64
    %138 = vmatprep.subr.mxu0 0.0
    %139 = vmatpush1.msra.mxu0 %v65
    %140 = vmatprep.subr.mxu0 0.0
    %141 = vmatpush1.msra.mxu0 %v66
    %142 = vmatprep.subr.mxu0 0.0
    %143 = vmatpush1.msra.mxu0 %v67
    %144 = vmatprep.subr.mxu0 0.0
    %145 = vmatpush1.msra.mxu0 %v68
    %146 = vmatprep.subr.mxu0 0.0
    %147 = vmatpush1.msra.mxu0 %v69
    %148 = vmatprep.subr.mxu0 0.0
    %149 = vmatpush1.msra.mxu0 %v70
    %150 = vmatprep.subr.mxu0 0.0
    %151 = vmatpush1.msra.mxu0 %v71
    %152 = vmatprep.subr.mxu0 0.0
    %153 = vmatpush1.msra.mxu0 %v72
    %154 = vmatprep.subr.mxu0 0.0
    %155 = vmatpush1.msra.mxu0 %v73
    %156 = vmatprep.mubr.f32.mxu0 %v89
    %157 = vmatmul.mubr.f32.gmra.mrb[0].mxu0 %v88
    %v158 = vpop.f32.mrb[0].mxu0
    %v159 = vadd.f32 %v79, %v158
    %v160 = vpop.f32.mrb[0].mxu0
    %161 = vdwg.mxu0
    %162 = vst [vmem:[#allocation7] sm:$0x3] %v159
    // Predicated region
    $region22: #{tpu_custom_call.1} parent=1 // pred_check
      _
    $region23: #{tpu_custom_call.1} parent=1 // pred_check_branch
      %164 = sbr.rel (0) target = $region25
    $region24: #{tpu_custom_call.1} parent=1 // pred_region
      %s166 = ssub.s32 32, 32
      %167 = vsyncadd [#allocation4], %s166
      %s169 = sshll.u32 [#allocation7], 4
      %s170 = int_to_ptr.vmem [resolvable:$true] %s169
      %172 = dma.vmem_to_hbm [thread:$0]  %s170, 32, %s3, [#allocation4]
    $region25: #{tpu_custom_call.1} parent=1 // pred_fallthru
      _
    // Predicated region
    $region26: #{tpu_custom_call.1} parent=1 // pred_check
      _
    $region27: #{tpu_custom_call.1} parent=1 // pred_check_branch
      %174 = sbr.rel (0) target = $region29
    $region28: #{tpu_custom_call.1} parent=1 // pred_region
      %175 = dma.done [#allocation4], 32
    $region29: #{tpu_custom_call.1} parent=1 // pred_fallthru
      _
    %176 = vsyncpa [#allocation3], 1
    %177 = vsyncpa [#allocation6], 1
    %178 = vsyncpa [#allocation4], 1

</llo_original>
